<compile_context>
chip_gen: v7x
topology: tpu7x:2x2x1
jax: 0.10.0
libtpu: 0.0.40
codegen_flags: <defaults>
</compile_context>

<pallas_src>
import numpy as np
import jax
import jax.numpy as jnp
from jax.experimental import pallas as pl
from jax.experimental.pallas import tpu as pltpu


# --------------------------------------------------------------------------
# Kernel
# --------------------------------------------------------------------------
def _basic_block_kernel(x_ref, wb1_ref, s1_ref, b1_ref, wb2_ref, s2_ref, b2_ref,
                        out_ref, mid_ref):
    """One batch tile per grid step.

    x_ref   : (bt, H+2, W*C)   bf16  input, H-halo rows are zero, lane-dense
    wb1_ref : (3, W*C, W*C)    bf16  banded conv1 weights (one per kernel row)
    wb2_ref : (3, W*C, W*C)    bf16  banded conv2 weights
    s*/b*   : (1, W*C)         f32   folded BN scale / bias (tiled over W)
    out_ref : (bt, H, W*C)     f32   output, lane-dense
    mid_ref : (bt, H+2, W*C)   bf16  VMEM scratch for the padded intermediate
    """
    bt, hp, lanes = x_ref.shape           # lanes = W * C  (= 128 here)
    h = hp - 2
    m = bt * h
    f32 = jnp.float32

    # ---- conv1: three banded matmuls (one per kernel row), K = N = W*C -----
    # The dx taps and the W zero-padding are already folded into wb1, so each
    # row tap is a single (m, W*C) @ (W*C, W*C) MXU matmul.
    slabs = [x_ref[:, dy:dy + h, :].reshape(m, lanes) for dy in range(3)]
    acc1 = jnp.dot(slabs[0], wb1_ref[0], preferred_element_type=f32)
    acc1 += jnp.dot(slabs[1], wb1_ref[1], preferred_element_type=f32)
    acc1 += jnp.dot(slabs[2], wb1_ref[2], preferred_element_type=f32)

    # ---- folded bn1 + relu (f32 elementwise) --------------------------------
    out1 = jnp.maximum(acc1 * s1_ref[...] + b1_ref[...], 0.0)

    # ---- stage intermediate (bf16) with a 1-row halo; zero only the halo ----
    mid_ref[:, 0:1, :] = jnp.zeros((bt, 1, lanes), mid_ref.dtype)
    mid_ref[:, h + 1:h + 2, :] = jnp.zeros((bt, 1, lanes), mid_ref.dtype)
    mid_ref[:, 1:h + 1, :] = out1.reshape(bt, h, lanes).astype(mid_ref.dtype)

    # ---- conv2: same banded-matmul structure --------------------------------
    acc2 = jnp.dot(mid_ref[:, 0:h, :].reshape(m, lanes), wb2_ref[0],
                   preferred_element_type=f32)
    acc2 += jnp.dot(mid_ref[:, 1:h + 1, :].reshape(m, lanes), wb2_ref[1],
                    preferred_element_type=f32)
    acc2 += jnp.dot(mid_ref[:, 2:h + 2, :].reshape(m, lanes), wb2_ref[2],
                    preferred_element_type=f32)

    # ---- folded bn2 + residual + relu ---------------------------------------
    # identity == the dy=1 (unshifted) input slab: x in this layout is already
    # (h, W*C) lane-dense, so no extra HBM stream and no unaligned slicing.
    ident = slabs[1].astype(f32)
    out2 = jnp.maximum(acc2 * s2_ref[...] + b2_ref[...] + ident, 0.0)

    out_ref[...] = out2.reshape(bt, h, lanes).astype(out_ref.dtype)


# --------------------------------------------------------------------------
# Wrapper
# --------------------------------------------------------------------------
def _banded_conv_weights(w_oihw, w_spatial):
    """(Cout, Cin, 3, 3) torch conv weight -> (3, W*Cin, W*Cout) banded mats.

    bw[dy][wi*Cin + ci, wo*Cout + co] = w[co, ci, dy, wi - wo + 1]
    (zero outside the band), so that with xrow[hp, wi*Cin+ci] = x_pad_h[hp,wi,ci]
        conv_out[h, wo, co] = sum_dy  xrow[h + dy, :] @ bw[dy]
    i.e. the W-direction taps and the W zero-padding live inside the matrices.
    """
    cout, cin, kh, kw = w_oihw.shape
    w_hwio = jnp.transpose(w_oihw, (2, 3, 1, 0)).astype(jnp.float32)  # (3,3,ci,co)
    mats = []
    for dy in range(kh):
        bw = jnp.zeros((w_spatial, cin, w_spatial, cout), jnp.float32)
        for dx in range(kw):
            # band[wi, wo] = 1 iff wi == wo + dx - 1   (padding = 1)
            band = jnp.eye(w_spatial, w_spatial, k=1 - dx, dtype=jnp.float32)
            bw = bw + jnp.einsum('pw,ic->piwc', band, w_hwio[dy, dx])
        mats.append(bw.reshape(w_spatial * cin, w_spatial * cout))
    return jnp.stack(mats, axis=0)


def basic_block_forward(x_nchw, w1, g1, be1, m1, v1, w2, g2, be2, m2, v2,
                        eps=1e-5, block_batch=None):
    """x_nchw: (N, C, H, W) f32.  w1/w2 in PyTorch layout (Cout, Cin, 3, 3)."""
    N, Cin, H, W = x_nchw.shape
    Cout = w1.shape[0]
    assert Cin == Cout, "identity path requires inplanes == planes (no downsample)"

    # Batch tile per grid step: keep >= 2 parallel steps when possible so the
    # two v7x TensorCores both get work; larger block_batch grows the matmul
    # M dimension instead.
    if block_batch is None:
        block_batch = 1 if N >= 2 else N
    bt = block_batch
    assert N % bt == 0
    lanes = W * Cout

    # NCHW -> (N, H+2, W*C) lane-dense rows with an H-halo only (the W halo is
    # folded into the banded weights and never materialized).  Cast to bf16
    # before padding to halve wrapper HBM traffic.
    # TODO(synk): accept NHWC at the API boundary to drop this transpose pass.
    x_rows = jnp.transpose(x_nchw, (0, 2, 3, 1)).reshape(N, H, W * Cin)
    x_rows = jnp.pad(x_rows.astype(jnp.bfloat16), ((0, 0), (1, 1), (0, 0)))

    # Banded conv weights (bf16 for the MXU).
    wb1 = _banded_conv_weights(w1, W).astype(jnp.bfloat16)   # (3, W*C, W*C)
    wb2 = _banded_conv_weights(w2, W).astype(jnp.bfloat16)

    # Fold BatchNorm (eval mode) into per-channel scale/bias, tiled to the
    # lane-dense (1, W*C) layout so no in-kernel re-broadcast is needed.
    def fold_bn(g, b, mean, var):
        s = (g / jnp.sqrt(var + eps)).astype(jnp.float32)
        bias = (b - mean * s).astype(jnp.float32)
        return (jnp.tile(s.reshape(1, Cout), (1, W)),
                jnp.tile(bias.reshape(1, Cout), (1, W)))
    s1, b1 = fold_bn(g1, be1, m1, v1)
    s2, b2 = fold_bn(g2, be2, m2, v2)

    grid_spec = pltpu.PrefetchScalarGridSpec(
        num_scalar_prefetch=0,
        grid=(N // bt,),
        in_specs=[
            pl.BlockSpec((bt, H + 2, W * Cin), lambda n: (n, 0, 0)),
            pl.BlockSpec((3, W * Cin, lanes), lambda n: (0, 0, 0)),
            pl.BlockSpec((1, lanes), lambda n: (0, 0)),
            pl.BlockSpec((1, lanes), lambda n: (0, 0)),
            pl.BlockSpec((3, lanes, lanes), lambda n: (0, 0, 0)),
            pl.BlockSpec((1, lanes), lambda n: (0, 0)),
            pl.BlockSpec((1, lanes), lambda n: (0, 0)),
        ],
        out_specs=pl.BlockSpec((bt, H, lanes), lambda n: (n, 0, 0)),
        scratch_shapes=[pltpu.VMEM((bt, H + 2, lanes), jnp.bfloat16)],
    )

    out = pl.pallas_call(
        _basic_block_kernel,
        out_shape=jax.ShapeDtypeStruct((N, H, lanes), jnp.float32),
        grid_spec=grid_spec,
        compiler_params=pltpu.CompilerParams(
            dimension_semantics=("parallel",)),
    )(x_rows, wb1, s1, b1, wb2, s2, b2)

    # (N, H, W*Cout) -> (N, Cout, H, W) to match the PyTorch convention.
    return jnp.transpose(out.reshape(N, H, W, Cout), (0, 3, 1, 2))


# --------------------------------------------------------------------------
# Plain-JAX reference (eval-mode BN, NCHW) for the correctness check
# --------------------------------------------------------------------------
def _reference_forward(x_nchw, w1, g1, be1, m1, v1, w2, g2, be2, m2, v2,
                       eps=1e-5):
    def conv(x, w):
        return jax.lax.conv_general_dilated(
            x, w, window_strides=(1, 1), padding=((1, 1), (1, 1)),
            dimension_numbers=("NCHW", "OIHW", "NCHW"))

    def bn(x, g, b, m, v):
        g = g.reshape(1, -1, 1, 1); b = b.reshape(1, -1, 1, 1)
        m = m.reshape(1, -1, 1, 1); v = v.reshape(1, -1, 1, 1)
        return (x - m) / jnp.sqrt(v + eps) * g + b

    out = jnp.maximum(bn(conv(x_nchw, w1), g1, be1, m1, v1), 0.0)
    out = bn(conv(out, w2), g2, be2, m2, v2)
    return jnp.maximum(out + x_nchw, 0.0)


if __name__ == "__main__":
    key = jax.random.PRNGKey(0)
    ks = jax.random.split(key, 12)

    N, C, H, W = 2, 8, 16, 16   # inplanes == planes == 8, stride=1; W*C = 128

    x = jax.random.normal(ks[0], (N, C, H, W), jnp.float32)

    # conv weights (PyTorch shape: out, in, kh, kw)
    w1 = jax.random.normal(ks[1], (C, C, 3, 3), jnp.float32) * 0.1
    w2 = jax.random.normal(ks[2], (C, C, 3, 3), jnp.float32) * 0.1

    # BN params / running stats (eval mode)
    g1 = 1.0 + 0.1 * jax.random.normal(ks[3], (C,), jnp.float32)
    be1 = 0.1 * jax.random.normal(ks[4], (C,), jnp.float32)
    m1 = 0.1 * jax.random.normal(ks[5], (C,), jnp.float32)
    v1 = 0.5 + jnp.abs(jax.random.normal(ks[6], (C,), jnp.float32))

    g2 = 1.0 + 0.1 * jax.random.normal(ks[7], (C,), jnp.float32)
    be2 = 0.1 * jax.random.normal(ks[8], (C,), jnp.float32)
    m2 = 0.1 * jax.random.normal(ks[9], (C,), jnp.float32)
    v2 = 0.5 + jnp.abs(jax.random.normal(ks[10], (C,), jnp.float32))

    out = basic_block_forward(x, w1, g1, be1, m1, v1, w2, g2, be2, m2, v2)
    out = jax.block_until_ready(out)

    ref = _reference_forward(x, w1, g1, be1, m1, v1, w2, g2, be2, m2, v2)
    ref = jax.block_until_ready(ref)

    # bf16 MXU operands (per the v5e/v6e guidance) -> loosened tolerance;
    # accumulation, BN, residual and ReLU are still f32.
    np.testing.assert_allclose(np.asarray(out), np.asarray(ref),
                               rtol=5e-2, atol=5e-2)
    print("KERNEL_OK")
</pallas_src>

<mosaic_0001>
module attributes {stable_mosaic.version = 11 : i64} {
  func.func @_basic_block_kernel(%arg0: i32, %arg1: memref<1x18x128xbf16, #tpu.memory_space<vmem>>, %arg2: memref<3x128x128xbf16, #tpu.memory_space<vmem>>, %arg3: memref<1x128xf32, #tpu.memory_space<vmem>>, %arg4: memref<1x128xf32, #tpu.memory_space<vmem>>, %arg5: memref<3x128x128xbf16, #tpu.memory_space<vmem>>, %arg6: memref<1x128xf32, #tpu.memory_space<vmem>>, %arg7: memref<1x128xf32, #tpu.memory_space<vmem>>, %arg8: memref<1x16x128xf32, #tpu.memory_space<vmem>>, %arg9: memref<1x18x128xbf16, #tpu.memory_space<vmem>>) attributes {dimension_semantics = [#tpu.dimension_semantics<parallel>], iteration_bounds = array<i64: 2>, scalar_prefetch = 0 : i64, scratch_operands = 1 : i64, tpu.core_type = #tpu.core_type<tc>, window_params = [{transform_indices = @transform_0, window_bounds = array<i64: 1, 18, 128>}, {pipeline_mode = #tpu.pipeline_mode<synchronous>, transform_indices = @transform_1, window_bounds = array<i64: 3, 128, 128>}, {pipeline_mode = #tpu.pipeline_mode<synchronous>, transform_indices = @transform_2, window_bounds = array<i64: 1, 128>}, {pipeline_mode = #tpu.pipeline_mode<synchronous>, transform_indices = @transform_3, window_bounds = array<i64: 1, 128>}, {pipeline_mode = #tpu.pipeline_mode<synchronous>, transform_indices = @transform_4, window_bounds = array<i64: 3, 128, 128>}, {pipeline_mode = #tpu.pipeline_mode<synchronous>, transform_indices = @transform_5, window_bounds = array<i64: 1, 128>}, {pipeline_mode = #tpu.pipeline_mode<synchronous>, transform_indices = @transform_6, window_bounds = array<i64: 1, 128>}, {transform_indices = @transform_7, window_bounds = array<i64: 1, 16, 128>}]} {
    %c0 = arith.constant 0 : index
    %c0_0 = arith.constant 0 : index
    %c0_1 = arith.constant 0 : index
    %0 = vector.load %arg1[%c0, %c0_0, %c0_1] : memref<1x18x128xbf16, #tpu.memory_space<vmem>>, vector<1x16x128xbf16>
    %1 = vector.shape_cast %0 : vector<1x16x128xbf16> to vector<16x128xbf16>
    %c0_2 = arith.constant 0 : index
    %c1 = arith.constant 1 : index
    %c0_3 = arith.constant 0 : index
    %2 = vector.load %arg1[%c0_2, %c1, %c0_3] : memref<1x18x128xbf16, #tpu.memory_space<vmem>>, vector<1x16x128xbf16>
    %3 = vector.shape_cast %2 : vector<1x16x128xbf16> to vector<16x128xbf16>
    %c0_4 = arith.constant 0 : index
    %c2 = arith.constant 2 : index
    %c0_5 = arith.constant 0 : index
    %4 = vector.load %arg1[%c0_4, %c2, %c0_5] : memref<1x18x128xbf16, #tpu.memory_space<vmem>>, vector<1x16x128xbf16>
    %5 = vector.shape_cast %4 : vector<1x16x128xbf16> to vector<16x128xbf16>
    %c0_6 = arith.constant 0 : index
    %c0_7 = arith.constant 0 : index
    %c0_8 = arith.constant 0 : index
    %6 = vector.load %arg2[%c0_6, %c0_7, %c0_8] : memref<3x128x128xbf16, #tpu.memory_space<vmem>>, vector<1x128x128xbf16>
    %7 = vector.shape_cast %6 : vector<1x128x128xbf16> to vector<128x128xbf16>
    %cst = arith.constant dense<0.000000e+00> : vector<16x128xf32>
    %8 = tpu.matmul %1, %7, %cst {dimension_numbers = #tpu.dot_dimension_numbers<[1], [0], [0], [1], [0, 0, 1, 1], [], []>} : vector<16x128xbf16>, vector<128x128xbf16>, vector<16x128xf32> -> vector<16x128xf32>
    %c1_9 = arith.constant 1 : index
    %c0_10 = arith.constant 0 : index
    %c0_11 = arith.constant 0 : index
    %9 = vector.load %arg2[%c1_9, %c0_10, %c0_11] : memref<3x128x128xbf16, #tpu.memory_space<vmem>>, vector<1x128x128xbf16>
    %10 = vector.shape_cast %9 : vector<1x128x128xbf16> to vector<128x128xbf16>
    %cst_12 = arith.constant dense<0.000000e+00> : vector<16x128xf32>
    %11 = tpu.matmul %3, %10, %cst_12 {dimension_numbers = #tpu.dot_dimension_numbers<[1], [0], [0], [1], [0, 0, 1, 1], [], []>} : vector<16x128xbf16>, vector<128x128xbf16>, vector<16x128xf32> -> vector<16x128xf32>
    %12 = arith.addf %8, %11 : vector<16x128xf32>
    %c2_13 = arith.constant 2 : index
    %c0_14 = arith.constant 0 : index
    %c0_15 = arith.constant 0 : index
    %13 = vector.load %arg2[%c2_13, %c0_14, %c0_15] : memref<3x128x128xbf16, #tpu.memory_space<vmem>>, vector<1x128x128xbf16>
    %14 = vector.shape_cast %13 : vector<1x128x128xbf16> to vector<128x128xbf16>
    %cst_16 = arith.constant dense<0.000000e+00> : vector<16x128xf32>
    %15 = tpu.matmul %5, %14, %cst_16 {dimension_numbers = #tpu.dot_dimension_numbers<[1], [0], [0], [1], [0, 0, 1, 1], [], []>} : vector<16x128xbf16>, vector<128x128xbf16>, vector<16x128xf32> -> vector<16x128xf32>
    %16 = arith.addf %12, %15 : vector<16x128xf32>
    %c0_17 = arith.constant 0 : index
    %c0_18 = arith.constant 0 : index
    %17 = vector.load %arg3[%c0_17, %c0_18] : memref<1x128xf32, #tpu.memory_space<vmem>>, vector<1x128xf32>
    %18 = vector.broadcast %17 : vector<1x128xf32> to vector<16x128xf32>
    %19 = arith.mulf %16, %18 : vector<16x128xf32>
    %c0_19 = arith.constant 0 : index
    %c0_20 = arith.constant 0 : index
    %20 = vector.load %arg4[%c0_19, %c0_20] : memref<1x128xf32, #tpu.memory_space<vmem>>, vector<1x128xf32>
    %21 = vector.broadcast %20 : vector<1x128xf32> to vector<16x128xf32>
    %22 = arith.addf %19, %21 : vector<16x128xf32>
    %cst_21 = arith.constant 0.000000e+00 : f32
    %23 = vector.broadcast %cst_21 : f32 to vector<16x128xf32>
    %24 = arith.maximumf %22, %23 : vector<16x128xf32>
    %cst_22 = arith.constant 0.000000e+00 : bf16
    %25 = vector.broadcast %cst_22 : bf16 to vector<1x1x128xbf16>
    %c0_23 = arith.constant 0 : index
    %c0_24 = arith.constant 0 : index
    %c0_25 = arith.constant 0 : index
    %26 = vector.load %arg9[%c0_23, %c0_24, %c0_25] : memref<1x18x128xbf16, #tpu.memory_space<vmem>>, vector<1x1x128xbf16>
    tpu.vector_store %arg9[%c0_23, %c0_24, %c0_25], %25 {strides = array<i32>} : memref<1x18x128xbf16, #tpu.memory_space<vmem>>, vector<1x1x128xbf16>,
    %cst_26 = arith.constant 0.000000e+00 : bf16
    %27 = vector.broadcast %cst_26 : bf16 to vector<1x1x128xbf16>
    %c0_27 = arith.constant 0 : index
    %c17 = arith.constant 17 : index
    %c0_28 = arith.constant 0 : index
    %28 = vector.load %arg9[%c0_27, %c17, %c0_28] : memref<1x18x128xbf16, #tpu.memory_space<vmem>>, vector<1x1x128xbf16>
    tpu.vector_store %arg9[%c0_27, %c17, %c0_28], %27 {strides = array<i32>} : memref<1x18x128xbf16, #tpu.memory_space<vmem>>, vector<1x1x128xbf16>,
    %29 = vector.shape_cast %24 : vector<16x128xf32> to vector<1x16x128xf32>
    %30 = arith.truncf %29 : vector<1x16x128xf32> to vector<1x16x128xbf16>
    %c0_29 = arith.constant 0 : index
    %c1_30 = arith.constant 1 : index
    %c0_31 = arith.constant 0 : index
    %31 = vector.load %arg9[%c0_29, %c1_30, %c0_31] : memref<1x18x128xbf16, #tpu.memory_space<vmem>>, vector<1x16x128xbf16>
    tpu.vector_store %arg9[%c0_29, %c1_30, %c0_31], %30 {strides = array<i32>} : memref<1x18x128xbf16, #tpu.memory_space<vmem>>, vector<1x16x128xbf16>,
    %c0_32 = arith.constant 0 : index
    %c0_33 = arith.constant 0 : index
    %c0_34 = arith.constant 0 : index
    %32 = vector.load %arg9[%c0_32, %c0_33, %c0_34] : memref<1x18x128xbf16, #tpu.memory_space<vmem>>, vector<1x16x128xbf16>
    %33 = vector.shape_cast %32 : vector<1x16x128xbf16> to vector<16x128xbf16>
    %c0_35 = arith.constant 0 : index
    %c0_36 = arith.constant 0 : index
    %c0_37 = arith.constant 0 : index
    %34 = vector.load %arg5[%c0_35, %c0_36, %c0_37] : memref<3x128x128xbf16, #tpu.memory_space<vmem>>, vector<1x128x128xbf16>
    %35 = vector.shape_cast %34 : vector<1x128x128xbf16> to vector<128x128xbf16>
    %cst_38 = arith.constant dense<0.000000e+00> : vector<16x128xf32>
    %36 = tpu.matmul %33, %35, %cst_38 {dimension_numbers = #tpu.dot_dimension_numbers<[1], [0], [0], [1], [0, 0, 1, 1], [], []>} : vector<16x128xbf16>, vector<128x128xbf16>, vector<16x128xf32> -> vector<16x128xf32>
    %c0_39 = arith.constant 0 : index
    %c1_40 = arith.constant 1 : index
    %c0_41 = arith.constant 0 : index
    %37 = vector.load %arg9[%c0_39, %c1_40, %c0_41] : memref<1x18x128xbf16, #tpu.memory_space<vmem>>, vector<1x16x128xbf16>
    %38 = vector.shape_cast %37 : vector<1x16x128xbf16> to vector<16x128xbf16>
    %c1_42 = arith.constant 1 : index
    %c0_43 = arith.constant 0 : index
    %c0_44 = arith.constant 0 : index
    %39 = vector.load %arg5[%c1_42, %c0_43, %c0_44] : memref<3x128x128xbf16, #tpu.memory_space<vmem>>, vector<1x128x128xbf16>
    %40 = vector.shape_cast %39 : vector<1x128x128xbf16> to vector<128x128xbf16>
    %cst_45 = arith.constant dense<0.000000e+00> : vector<16x128xf32>
    %41 = tpu.matmul %38, %40, %cst_45 {dimension_numbers = #tpu.dot_dimension_numbers<[1], [0], [0], [1], [0, 0, 1, 1], [], []>} : vector<16x128xbf16>, vector<128x128xbf16>, vector<16x128xf32> -> vector<16x128xf32>
    %42 = arith.addf %36, %41 : vector<16x128xf32>
    %c0_46 = arith.constant 0 : index
    %c2_47 = arith.constant 2 : index
    %c0_48 = arith.constant 0 : index
    %43 = vector.load %arg9[%c0_46, %c2_47, %c0_48] : memref<1x18x128xbf16, #tpu.memory_space<vmem>>, vector<1x16x128xbf16>
    %44 = vector.shape_cast %43 : vector<1x16x128xbf16> to vector<16x128xbf16>
    %c2_49 = arith.constant 2 : index
    %c0_50 = arith.constant 0 : index
    %c0_51 = arith.constant 0 : index
    %45 = vector.load %arg5[%c2_49, %c0_50, %c0_51] : memref<3x128x128xbf16, #tpu.memory_space<vmem>>, vector<1x128x128xbf16>
    %46 = vector.shape_cast %45 : vector<1x128x128xbf16> to vector<128x128xbf16>
    %cst_52 = arith.constant dense<0.000000e+00> : vector<16x128xf32>
    %47 = tpu.matmul %44, %46, %cst_52 {dimension_numbers = #tpu.dot_dimension_numbers<[1], [0], [0], [1], [0, 0, 1, 1], [], []>} : vector<16x128xbf16>, vector<128x128xbf16>, vector<16x128xf32> -> vector<16x128xf32>
    %48 = arith.addf %42, %47 : vector<16x128xf32>
    %49 = arith.extf %3 : vector<16x128xbf16> to vector<16x128xf32>
    %c0_53 = arith.constant 0 : index
    %c0_54 = arith.constant 0 : index
    %50 = vector.load %arg6[%c0_53, %c0_54] : memref<1x128xf32, #tpu.memory_space<vmem>>, vector<1x128xf32>
    %51 = vector.broadcast %50 : vector<1x128xf32> to vector<16x128xf32>
    %52 = arith.mulf %48, %51 : vector<16x128xf32>
    %c0_55 = arith.constant 0 : index
    %c0_56 = arith.constant 0 : index
    %53 = vector.load %arg7[%c0_55, %c0_56] : memref<1x128xf32, #tpu.memory_space<vmem>>, vector<1x128xf32>
    %54 = vector.broadcast %53 : vector<1x128xf32> to vector<16x128xf32>
    %55 = arith.addf %52, %54 : vector<16x128xf32>
    %56 = arith.addf %55, %49 : vector<16x128xf32>
    %cst_57 = arith.constant 0.000000e+00 : f32
    %57 = vector.broadcast %cst_57 : f32 to vector<16x128xf32>
    %58 = arith.maximumf %56, %57 : vector<16x128xf32>
    %59 = vector.shape_cast %58 : vector<16x128xf32> to vector<1x16x128xf32>
    %c0_58 = arith.constant 0 : index
    %c0_59 = arith.constant 0 : index
    %c0_60 = arith.constant 0 : index
    %60 = vector.load %arg8[%c0_58, %c0_59, %c0_60] : memref<1x16x128xf32, #tpu.memory_space<vmem>>, vector<1x16x128xf32>
    tpu.vector_store %arg8[%c0_58, %c0_59, %c0_60], %59 {strides = array<i32>} : memref<1x16x128xf32, #tpu.memory_space<vmem>>, vector<1x16x128xf32>,
    return
  }
  func.func @transform_0(%arg0: i32) -> (i32, i32, i32) {
    %c0_i32 = arith.constant 0 : i32
    %c0_i32_0 = arith.constant 0 : i32
    %c0_i32_1 = arith.constant 0 : i32
    return %arg0, %c0_i32, %c0_i32_0 : i32, i32, i32
  }
  func.func @transform_1(%arg0: i32) -> (i32, i32, i32) {
    %c0_i32 = arith.constant 0 : i32
    %c0_i32_0 = arith.constant 0 : i32
    %c0_i32_1 = arith.constant 0 : i32
    %c0_i32_2 = arith.constant 0 : i32
    return %c0_i32, %c0_i32_0, %c0_i32_1 : i32, i32, i32
  }
  func.func @transform_2(%arg0: i32) -> (i32, i32) {
    %c0_i32 = arith.constant 0 : i32
    %c0_i32_0 = arith.constant 0 : i32
    %c0_i32_1 = arith.constant 0 : i32
    return %c0_i32, %c0_i32_0 : i32, i32
  }
  func.func @transform_3(%arg0: i32) -> (i32, i32) {
    %c0_i32 = arith.constant 0 : i32
    %c0_i32_0 = arith.constant 0 : i32
    %c0_i32_1 = arith.constant 0 : i32
    return %c0_i32, %c0_i32_0 : i32, i32
  }
  func.func @transform_4(%arg0: i32) -> (i32, i32, i32) {
    %c0_i32 = arith.constant 0 : i32
    %c0_i32_0 = arith.constant 0 : i32
    %c0_i32_1 = arith.constant 0 : i32
    %c0_i32_2 = arith.constant 0 : i32
    return %c0_i32, %c0_i32_0, %c0_i32_1 : i32, i32, i32
  }
  func.func @transform_5(%arg0: i32) -> (i32, i32) {
    %c0_i32 = arith.constant 0 : i32
    %c0_i32_0 = arith.constant 0 : i32
    %c0_i32_1 = arith.constant 0 : i32
    return %c0_i32, %c0_i32_0 : i32, i32
  }
  func.func @transform_6(%arg0: i32) -> (i32, i32) {
    %c0_i32 = arith.constant 0 : i32
    %c0_i32_0 = arith.constant 0 : i32
    %c0_i32_1 = arith.constant 0 : i32
    return %c0_i32, %c0_i32_0 : i32, i32
  }
  func.func @transform_7(%arg0: i32) -> (i32, i32, i32) {
    %c0_i32 = arith.constant 0 : i32
    %c0_i32_0 = arith.constant 0 : i32
    %c0_i32_1 = arith.constant 0 : i32
    return %arg0, %c0_i32, %c0_i32_0 : i32, i32, i32
  }
}

</mosaic_0001>

<llo_original>
// kernel: tpu_custom_call.1
$region0: #{tpu_custom_call.1}
  #allocation0 [shape = 'u32[]', space=smem, size = 0x4, offset = 0x4, fixed_abs, tag = 'smem constant byte address 0x4 - core index']
  #allocation1 [shape = 'u32[144,128]{1,0:T(1,128)}', space=vmem, size = 0x12000, scoped, tag = 'internal scratch']
  #allocation2 [shape = 'bf16[1,18,128]{2,1,0:T(8,128)(2,1)}', space=vmem, size = 0x1800, scoped, tag = 'scratch operand']
  %s0 = inlined_call_operand.vmem [shape: bf16[2,18,128], index: 0, kind: input, shape index: {}]
  %s1 = inlined_call_operand.hbm [shape: bf16[3,128,128], index: 1, kind: input, shape index: {}]
  %s2 = inlined_call_operand.vmem [shape: f32[1,128], index: 2, kind: input, shape index: {}]
  %s3 = inlined_call_operand.vmem [shape: f32[1,128], index: 3, kind: input, shape index: {}]
  %s4 = inlined_call_operand.hbm [shape: bf16[3,128,128], index: 4, kind: input, shape index: {}]
  %s5 = inlined_call_operand.vmem [shape: f32[1,128], index: 5, kind: input, shape index: {}]
  %s6 = inlined_call_operand.vmem [shape: f32[1,128], index: 6, kind: input, shape index: {}]
  %s7 = inlined_call_operand.hbm [shape: f32[2,16,128], index: 7, kind: output, shape index: {}]
  %s8 = sld [smem:[#allocation0]]
  $region69: #{tpu_custom_call.1} parent=0
    _
  %s10 = ssub.s32 1, %s8
  %s11 = scalar_select 0, %s10, %s8
  $region1: #{tpu_custom_call.1} parent=0
    #allocation3 [shape = 'u8[98304]{0}', space=vmem, size = 0x18000, scoped, tag = 'input window, operand 1, single buffered']
    #allocation4 [shape = 's32[2]{0}', space=sflag, size = 0x8, scoped, tag = 'scoped memory for tpu_custom_call.1']
    #allocation5 [shape = 's32[2]{0}', space=sflag, size = 0x8, scoped, tag = 'scoped memory for tpu_custom_call.1']
    #allocation6 [shape = 'u8[98304]{0}', space=vmem, size = 0x18000, scoped, tag = 'input window, operand 4, single buffered']
    #allocation7 [shape = 's32[1]{0}', space=sflag, size = 0x4, scoped, tag = 'scoped memory for tpu_custom_call.1']
    #allocation8 [shape = 'u8[16384]{0}', space=vmem, size = 0x4000, scoped, tag = 'output window, operand 0']
    %12 = vsyncpa [#allocation4], 0
    %13 = vsyncpa [#allocation7], 0
    %14 = vsyncpa [#allocation5], 0
    %s15 = scalar_lea.sflag [#allocation5], 1
    %16 = vsyncpa %s15, 0
    loop: start=0, step=1, limit=4
    $region2: #{tpu_custom_call.1} parent=1 // loop_pre_header
      _
    $region3: #{tpu_custom_call.1} parent=1 // loop_header
      %s18 = sphi 0, %s22
      %p19 = scmp.ge.s32.totalorder %s18, 4
      %s28 = sphi 0, %s30
      %s31 = sphi 0, %s28
      %s32 = sphi 0, %s31
      %s48 = sphi 0, %s32
      %s52 = sphi 0, %s52
      %s54 = sphi 0, %s52
      %s55 = sphi 0, %s54
      %s69 = sphi 0, %s55
      %s73 = sphi 0, %s73
      %s75 = sphi 0, %s73
      %s76 = sphi 0, %s75
      %s90 = sphi 0, %s76
      %s94 = sphi 0, %s94
      %s96 = sphi 0, %s94
      %s97 = sphi 0, %s96
      %s111 = sphi 0, %s97
      %s115 = sphi 0, %s115
      %s117 = sphi 0, %s115
      %s118 = sphi 0, %s117
      %s132 = sphi 0, %s118
      %s136 = sphi 0, %s136
      %s138 = sphi 0, %s136
      %s139 = sphi 0, %s138
      %s153 = sphi 0, %s139
      %s157 = sphi 0, %s157
      %s159 = sphi 0, %s157
      %s160 = sphi 0, %s159
      %s174 = sphi 0, %s160
      %s180 = sphi 0, %s182
      %s183 = sphi 0, %s180
      %s184 = sphi 0, %s183
      %s200 = sphi 0, %s184
    $region4: #{tpu_custom_call.1} parent=1 // loop_header_branch
      %21 = sbr.rel (%p19) target = $region8
    $region5: #{tpu_custom_call.1} parent=1 // loop_body
      %s23 = ssub.s32 %s18, 1
      %s24 = ssub.s32 %s18, 2
      %s25 = sadd.s32 %s18, 1
      %s26 = ssub.s32 %s18, %s25
      %p27 = scmp.eq.s32.totalorder %s26, 0
      %s29 = sadd.s32 %s28, 1
      %s30 = scalar_select %p27, %s28, %s29
      %p33 = pneg %p27
      %p34 = scmp.eq.s32.totalorder %s18, 1
      %p35 = por %p33, %p34
      %p36 = scmp.ne.s32.totalorder %s28, %s31
      %p37 = scmp.eq.s32.totalorder %s18, 0
      %p38 = por %p36, %p37
      %p39 = scmp.ne.s32.totalorder %s28, %s31
      %p40 = scmp.eq.s32.totalorder %s23, 1
      %p41 = por %p39, %p40
      %p42 = scmp.ne.s32.totalorder %s31, %s32
      %p43 = scmp.eq.s32.totalorder %s23, 0
      %p44 = por %p42, %p43
      %p45 = scmp.ne.s32.totalorder %s31, %s32
      %p46 = scmp.eq.s32.totalorder %s24, 1
      %p47 = por %p45, %p46
      %p49 = scmp.ne.s32.totalorder %s32, %s48
      %p50 = scmp.eq.s32.totalorder %s24, 0
      %p51 = por %p49, %p50
      %s53 = sadd.s32 %s52, 1
      %p56 = scmp.eq.s32.totalorder %s18, 1
      %p57 = scmp.ne.s32.totalorder %s52, %s54
      %p58 = scmp.eq.s32.totalorder %s18, 0
      %p59 = por %p57, %p58
      %p60 = scmp.ne.s32.totalorder %s52, %s54
      %p61 = scmp.eq.s32.totalorder %s23, 1
      %p62 = por %p60, %p61
      %p63 = scmp.ne.s32.totalorder %s54, %s55
      %p64 = scmp.eq.s32.totalorder %s23, 0
      %p65 = por %p63, %p64
      %p66 = scmp.ne.s32.totalorder %s54, %s55
      %p67 = scmp.eq.s32.totalorder %s24, 1
      %p68 = por %p66, %p67
      %p70 = scmp.ne.s32.totalorder %s55, %s69
      %p71 = scmp.eq.s32.totalorder %s24, 0
      %p72 = por %p70, %p71
      %s74 = sadd.s32 %s73, 1
      %p77 = scmp.eq.s32.totalorder %s18, 1
      %p78 = scmp.ne.s32.totalorder %s73, %s75
      %p79 = scmp.eq.s32.totalorder %s18, 0
      %p80 = por %p78, %p79
      %p81 = scmp.ne.s32.totalorder %s73, %s75
      %p82 = scmp.eq.s32.totalorder %s23, 1
      %p83 = por %p81, %p82
      %p84 = scmp.ne.s32.totalorder %s75, %s76
      %p85 = scmp.eq.s32.totalorder %s23, 0
      %p86 = por %p84, %p85
      %p87 = scmp.ne.s32.totalorder %s75, %s76
      %p88 = scmp.eq.s32.totalorder %s24, 1
      %p89 = por %p87, %p88
      %p91 = scmp.ne.s32.totalorder %s76, %s90
      %p92 = scmp.eq.s32.totalorder %s24, 0
      %p93 = por %p91, %p92
      %s95 = sadd.s32 %s94, 1
      %p98 = scmp.eq.s32.totalorder %s18, 1
      %p99 = scmp.ne.s32.totalorder %s94, %s96
      %p100 = scmp.eq.s32.totalorder %s18, 0
      %p101 = por %p99, %p100
      %p102 = scmp.ne.s32.totalorder %s94, %s96
      %p103 = scmp.eq.s32.totalorder %s23, 1
      %p104 = por %p102, %p103
      %p105 = scmp.ne.s32.totalorder %s96, %s97
      %p106 = scmp.eq.s32.totalorder %s23, 0
      %p107 = por %p105, %p106
      %p108 = scmp.ne.s32.totalorder %s96, %s97
      %p109 = scmp.eq.s32.totalorder %s24, 1
      %p110 = por %p108, %p109
      %p112 = scmp.ne.s32.totalorder %s97, %s111
      %p113 = scmp.eq.s32.totalorder %s24, 0
      %p114 = por %p112, %p113
      %s116 = sadd.s32 %s115, 1
      %p119 = scmp.eq.s32.totalorder %s18, 1
      %p120 = scmp.ne.s32.totalorder %s115, %s117
      %p121 = scmp.eq.s32.totalorder %s18, 0
      %p122 = por %p120, %p121
      %p123 = scmp.ne.s32.totalorder %s115, %s117
      %p124 = scmp.eq.s32.totalorder %s23, 1
      %p125 = por %p123, %p124
      %p126 = scmp.ne.s32.totalorder %s117, %s118
      %p127 = scmp.eq.s32.totalorder %s23, 0
      %p128 = por %p126, %p127
      %p129 = scmp.ne.s32.totalorder %s117, %s118
      %p130 = scmp.eq.s32.totalorder %s24, 1
      %p131 = por %p129, %p130
      %p133 = scmp.ne.s32.totalorder %s118, %s132
      %p134 = scmp.eq.s32.totalorder %s24, 0
      %p135 = por %p133, %p134
      %s137 = sadd.s32 %s136, 1
      %p140 = scmp.eq.s32.totalorder %s18, 1
      %p141 = scmp.ne.s32.totalorder %s136, %s138
      %p142 = scmp.eq.s32.totalorder %s18, 0
      %p143 = por %p141, %p142
      %p144 = scmp.ne.s32.totalorder %s136, %s138
      %p145 = scmp.eq.s32.totalorder %s23, 1
      %p146 = por %p144, %p145
      %p147 = scmp.ne.s32.totalorder %s138, %s139
      %p148 = scmp.eq.s32.totalorder %s23, 0
      %p149 = por %p147, %p148
      %p150 = scmp.ne.s32.totalorder %s138, %s139
      %p151 = scmp.eq.s32.totalorder %s24, 1
      %p152 = por %p150, %p151
      %p154 = scmp.ne.s32.totalorder %s139, %s153
      %p155 = scmp.eq.s32.totalorder %s24, 0
      %p156 = por %p154, %p155
      %s158 = sadd.s32 %s157, 1
      %p161 = scmp.eq.s32.totalorder %s18, 1
      %p162 = scmp.ne.s32.totalorder %s157, %s159
      %p163 = scmp.eq.s32.totalorder %s18, 0
      %p164 = por %p162, %p163
      %p165 = scmp.ne.s32.totalorder %s157, %s159
      %p166 = scmp.eq.s32.totalorder %s23, 1
      %p167 = por %p165, %p166
      %p168 = scmp.ne.s32.totalorder %s159, %s160
      %p169 = scmp.eq.s32.totalorder %s23, 0
      %p170 = por %p168, %p169
      %p171 = scmp.ne.s32.totalorder %s159, %s160
      %p172 = scmp.eq.s32.totalorder %s24, 1
      %p173 = por %p171, %p172
      %p175 = scmp.ne.s32.totalorder %s160, %s174
      %p176 = scmp.eq.s32.totalorder %s24, 0
      %p177 = por %p175, %p176
      %s178 = ssub.s32 %s18, %s25
      %p179 = scmp.eq.s32.totalorder %s178, 0
      %s181 = sadd.s32 %s180, 1
      %s182 = scalar_select %p179, %s180, %s181
      %p185 = pneg %p179
      %p186 = scmp.eq.s32.totalorder %s18, 1
      %p187 = por %p185, %p186
      %p188 = scmp.ne.s32.totalorder %s180, %s183
      %p189 = scmp.eq.s32.totalorder %s18, 0
      %p190 = por %p188, %p189
      %p191 = scmp.ne.s32.totalorder %s180, %s183
      %p192 = scmp.eq.s32.totalorder %s23, 1
      %p193 = por %p191, %p192
      %p194 = scmp.ne.s32.totalorder %s183, %s184
      %p195 = scmp.eq.s32.totalorder %s23, 0
      %p196 = por %p194, %p195
      %p197 = scmp.ne.s32.totalorder %s183, %s184
      %p198 = scmp.eq.s32.totalorder %s24, 1
      %p199 = por %p197, %p198
      %p201 = scmp.ne.s32.totalorder %s184, %s200
      %p202 = scmp.eq.s32.totalorder %s24, 0
      %p203 = por %p201, %p202
      %p204 = scmp.le.s32.totalorder 1, %s18
      %p205 = scmp.lt.s32.totalorder %s18, 3
      %p206 = pnand %p204, %p205
      %p207 = pneg %p206
      // Predicated region
      $region9: #{tpu_custom_call.1} parent=5 // pred_check
        _
      $region10: #{tpu_custom_call.1} parent=5 // pred_check_branch
        %209 = sbr.rel (%p206) target = $region12
      $region11: #{tpu_custom_call.1} parent=5 // pred_region
        %s210 = ssub.s32 %s18, 1
        // Predicated region
        $region13: #{tpu_custom_call.1} parent=11 // pred_check
          %p211 = pneg %p65
        $region14: #{tpu_custom_call.1} parent=11 // pred_check_branch
          %213 = sbr.rel (%p211) target = $region16
        $region15: #{tpu_custom_call.1} parent=11 // pred_region
          %s215 = ssub.s32 3072, 3072
          %216 = vsyncadd [#allocation4], %s215
          %s217 = sshll.u32 [#allocation3], 4
          %s218 = int_to_ptr.vmem [resolvable:$true] %s217
          %223 = dma.hbm_to_vmem [thread:$0]  %s1, 3072, %s218, [#allocation4], 64, 64, 4
        $region16: #{tpu_custom_call.1} parent=11 // pred_fallthru
          _
        // Predicated region
        $region17: #{tpu_custom_call.1} parent=11 // pred_check
          %p224 = pneg %p86
        $region18: #{tpu_custom_call.1} parent=11 // pred_check_branch
          %226 = sbr.rel (%p224) target = $region20
        $region19: #{tpu_custom_call.1} parent=11 // pred_region
          _
        $region20: #{tpu_custom_call.1} parent=11 // pred_fallthru
          _
        // Predicated region
        $region21: #{tpu_custom_call.1} parent=11 // pred_check
          %p227 = pneg %p107
        $region22: #{tpu_custom_call.1} parent=11 // pred_check_branch
          %229 = sbr.rel (%p227) target = $region24
        $region23: #{tpu_custom_call.1} parent=11 // pred_region
          _
        $region24: #{tpu_custom_call.1} parent=11 // pred_fallthru
          _
        // Predicated region
        $region25: #{tpu_custom_call.1} parent=11 // pred_check
          %p230 = pneg %p128
        $region26: #{tpu_custom_call.1} parent=11 // pred_check_branch
          %232 = sbr.rel (%p230) target = $region28
        $region27: #{tpu_custom_call.1} parent=11 // pred_region
          %s234 = ssub.s32 3072, 3072
          %235 = vsyncadd [#allocation7], %s234
          %s236 = sshll.u32 [#allocation6], 4
          %s237 = int_to_ptr.vmem [resolvable:$true] %s236
          %242 = dma.hbm_to_vmem [thread:$0]  %s4, 3072, %s237, [#allocation7], 64, 64, 4
        $region28: #{tpu_custom_call.1} parent=11 // pred_fallthru
          _
        // Predicated region
        $region29: #{tpu_custom_call.1} parent=11 // pred_check
          %p243 = pneg %p149
        $region30: #{tpu_custom_call.1} parent=11 // pred_check_branch
          %245 = sbr.rel (%p243) target = $region32
        $region31: #{tpu_custom_call.1} parent=11 // pred_region
          _
        $region32: #{tpu_custom_call.1} parent=11 // pred_fallthru
          _
        // Predicated region
        $region33: #{tpu_custom_call.1} parent=11 // pred_check
          %p246 = pneg %p170
        $region34: #{tpu_custom_call.1} parent=11 // pred_check_branch
          %248 = sbr.rel (%p246) target = $region36
        $region35: #{tpu_custom_call.1} parent=11 // pred_region
          _
        $region36: #{tpu_custom_call.1} parent=11 // pred_fallthru
          _
      $region12: #{tpu_custom_call.1} parent=5 // pred_fallthru
        _
      %p249 = scmp.lt.s32.totalorder %s18, 2
      // Predicated region
      $region37: #{tpu_custom_call.1} parent=5 // pred_check
        %p250 = pneg %p249
      $region38: #{tpu_custom_call.1} parent=5 // pred_check_branch
        %252 = sbr.rel (%p250) target = $region40
      $region39: #{tpu_custom_call.1} parent=5 // pred_region
        // Predicated region
        $region41: #{tpu_custom_call.1} parent=39 // pred_check
          %p253 = pneg %p38
        $region42: #{tpu_custom_call.1} parent=39 // pred_check_branch
          %255 = sbr.rel (%p253) target = $region44
        $region43: #{tpu_custom_call.1} parent=39 // pred_region
          %p256 = scmp.lt.s32.totalorder %s18, 1
          %s257 = scalar_select %p256, %s18, 1
          %s258 = smul.addr %s257, 3
          %s259 = smul.addr %s258, 4
          %s260 = scalar_lea.vmem %s0, %s259
        $region44: #{tpu_custom_call.1} parent=39 // pred_fallthru
          _
      $region40: #{tpu_custom_call.1} parent=5 // pred_fallthru
        _
      %p261 = scmp.le.s32.totalorder 1, %s18
      %p262 = scmp.lt.s32.totalorder %s18, 3
      %p263 = pnand %p261, %p262
      %p264 = pneg %p263
      // Predicated region
      $region45: #{tpu_custom_call.1} parent=5 // pred_check
        _
      $region46: #{tpu_custom_call.1} parent=5 // pred_check_branch
        %266 = sbr.rel (%p263) target = $region48
      $region47: #{tpu_custom_call.1} parent=5 // pred_region
        %s267 = ssub.s32 %s18, 1
        // Predicated region
        $region49: #{tpu_custom_call.1} parent=47 // pred_check
          %p268 = pneg %p65
        $region50: #{tpu_custom_call.1} parent=47 // pred_check_branch
          %270 = sbr.rel (%p268) target = $region52
        $region51: #{tpu_custom_call.1} parent=47 // pred_region
          %271 = dma.done [#allocation4], 3072
        $region52: #{tpu_custom_call.1} parent=47 // pred_fallthru
          _
        // Predicated region
        $region53: #{tpu_custom_call.1} parent=47 // pred_check
          %p272 = pneg %p128
        $region54: #{tpu_custom_call.1} parent=47 // pred_check_branch
          %274 = sbr.rel (%p272) target = $region56
        $region55: #{tpu_custom_call.1} parent=47 // pred_region
          %275 = dma.done [#allocation7], 3072
        $region56: #{tpu_custom_call.1} parent=47 // pred_fallthru
          _
        %p276 = scmp.lt.s32.totalorder %s23, 1
        %s277 = scalar_select %p276, %s23, 1
        %s278 = smul.addr %s277, 3
        %s279 = smul.addr %s278, 4
        %s280 = scalar_lea.vmem %s0, %s279
        %p281 = pneg %p44
        %p282 = pneg %p41
        %p283 = pneg %p65
        %p284 = pneg %p62
        %p285 = pneg %p86
        %p286 = pneg %p83
        %p287 = pneg %p107
        %p288 = pneg %p104
        %p289 = pneg %p128
        %p290 = pneg %p125
        %p291 = pneg %p149
        %p292 = pneg %p146
        %p293 = pneg %p170
        %p294 = pneg %p167
        %p295 = pneg %p196
        %p296 = pneg %p193
        %s297 = sand.u32 %s183, 1
        %s298 = scalar_lea.sflag [#allocation5], %s297
        %s299 = sand.u32 %s183, 1
        %s300 = smul.addr %s299, 16
        %s301 = scalar_lea.vmem [#allocation8], %s300
        %p302 = scmp.lt.s32.totalorder %s23, 1
        %s303 = scalar_select %p302, %s23, 1
        %s304 = smul.addr %s303, 3
        %s305 = smul.addr %s304, 4
        %s306 = scalar_lea.vmem %s0, %s305
        %v308 = vld [vmem:[%s306] sm:$0xf]
        %v309 = vld [vmem:[%s306 + $0x4] sm:$0xf]
        %v310 = vld [vmem:[%s306 + $0x8] sm:$0x1]
        %v311 = vld [vmem:[%s306] sm:$0xe]
        %v312 = vld [vmem:[#allocation3] sm:$0xf]
        %v313 = vld [vmem:[#allocation3 + $0x4] sm:$0xf]
        %v314 = vld [vmem:[#allocation3 + $0x8] sm:$0xf]
        %v315 = vld [vmem:[#allocation3 + $0xc] sm:$0xf]
        %v316 = vld [vmem:[#allocation3 + $0x10] sm:$0xf]
        %v317 = vld [vmem:[#allocation3 + $0x14] sm:$0xf]
        %v318 = vld [vmem:[#allocation3 + $0x18] sm:$0xf]
        %v319 = vld [vmem:[#allocation3 + $0x1c] sm:$0xf]
        %v320 = vld [vmem:[#allocation3 + $0x20] sm:$0xf]
        %v321 = vld [vmem:[#allocation3 + $0x24] sm:$0xf]
        %v322 = vld [vmem:[#allocation3 + $0x28] sm:$0xf]
        %v323 = vld [vmem:[#allocation3 + $0x2c] sm:$0xf]
        %v324 = vld [vmem:[#allocation3 + $0x30] sm:$0xf]
        %v325 = vld [vmem:[#allocation3 + $0x34] sm:$0xf]
        %v326 = vld [vmem:[#allocation3 + $0x38] sm:$0xf]
        %v327 = vld [vmem:[#allocation3 + $0x3c] sm:$0xf]
        %s328 = scalar_lea.vmem [#allocation3], 64
        %v329 = vld [vmem:[%s328] sm:$0xf]
        %v330 = vld [vmem:[%s328 + $0x4] sm:$0xf]
        %v331 = vld [vmem:[%s328 + $0x8] sm:$0xf]
        %v332 = vld [vmem:[%s328 + $0xc] sm:$0xf]
        %v333 = vld [vmem:[%s328 + $0x10] sm:$0xf]
        %v334 = vld [vmem:[%s328 + $0x14] sm:$0xf]
        %v335 = vld [vmem:[%s328 + $0x18] sm:$0xf]
        %v336 = vld [vmem:[%s328 + $0x1c] sm:$0xf]
        %v337 = vld [vmem:[%s328 + $0x20] sm:$0xf]
        %v338 = vld [vmem:[%s328 + $0x24] sm:$0xf]
        %v339 = vld [vmem:[%s328 + $0x28] sm:$0xf]
        %v340 = vld [vmem:[%s328 + $0x2c] sm:$0xf]
        %v341 = vld [vmem:[%s328 + $0x30] sm:$0xf]
        %v342 = vld [vmem:[%s328 + $0x34] sm:$0xf]
        %v343 = vld [vmem:[%s328 + $0x38] sm:$0xf]
        %v344 = vld [vmem:[%s328 + $0x3c] sm:$0xf]
        %v348 = vunpack.c.l.b16 %v308
        %v349 = vunpack.c.l.b16 %v309
        %v350 = vunpack.c.l.b16 %v310
        %v351 = vpack.c.b16 %v349, %v348
        %v352 = vpack.c.b16 %v350, %v350
        %vm353 = vsmask.f32 7424
        %v355 = vshrl.u32 %v351, 16
        %v357 = vshll.u32 %v351, 16
        %v359 = vrot.slane %v357, 1
        %v360 = vor.u32 %v355, %v359
        %v362 = vshll.u32 %v352, 16
        %v364 = vrot.slane %v362, 1
        %v365 = vsel %vm353, %v360, %v364
        %v383 = vunpack.c.l.b16 %v329
        %v384 = vunpack.c.l.b16 %v330
        %v385 = vunpack.c.l.b16 %v331
        %v386 = vunpack.c.l.b16 %v332
        %v387 = vunpack.c.l.b16 %v333
        %v388 = vunpack.c.l.b16 %v334
        %v389 = vunpack.c.l.b16 %v335
        %v390 = vunpack.c.l.b16 %v336
        %v391 = vunpack.c.l.b16 %v337
        %v392 = vunpack.c.l.b16 %v338
        %v393 = vunpack.c.l.b16 %v339
        %v394 = vunpack.c.l.b16 %v340
        %v395 = vunpack.c.l.b16 %v341
        %v396 = vunpack.c.l.b16 %v342
        %v397 = vunpack.c.l.b16 %v343
        %v398 = vunpack.c.l.b16 %v344
        %v399 = vpack.c.b16 %v384, %v383
        %v400 = vpack.c.b16 %v386, %v385
        %v401 = vpack.c.b16 %v388, %v387
        %v402 = vpack.c.b16 %v390, %v389
        %v403 = vpack.c.b16 %v392, %v391
        %v404 = vpack.c.b16 %v394, %v393
        %v405 = vpack.c.b16 %v396, %v395
        %v406 = vpack.c.b16 %v398, %v397
        %415 = vmatprep.subr.bf16.mxu0 0
        %416 = vmatpush1.bf16.msra.mxu0 %v399
        %417 = vmatprep.subr.bf16.mxu0 0
        %418 = vmatpush1.bf16.msra.mxu0 %v400
        %419 = vmatprep.subr.bf16.mxu0 0
        %420 = vmatpush1.bf16.msra.mxu0 %v401
        %421 = vmatprep.subr.bf16.mxu0 0
        %422 = vmatpush1.bf16.msra.mxu0 %v402
        %423 = vmatprep.subr.bf16.mxu0 0
        %424 = vmatpush1.bf16.msra.mxu0 %v403
        %425 = vmatprep.subr.bf16.mxu0 0
        %426 = vmatpush1.bf16.msra.mxu0 %v404
        %427 = vmatprep.subr.bf16.mxu0 0
        %428 = vmatpush1.bf16.msra.mxu0 %v405
        %429 = vmatprep.subr.bf16.mxu0 0
        %430 = vmatpush1.bf16.msra.mxu0 %v406
        %431 = vmatprep.subr.bf16.mxu0 0
        %432 = vmatpush1.bf16.msra.mxu0 0
        %433 = vmatprep.subr.bf16.mxu0 0
        %434 = vmatpush1.bf16.msra.mxu0 0
        %435 = vmatprep.subr.bf16.mxu0 0
        %436 = vmatpush1.bf16.msra.mxu0 0
        %437 = vmatprep.subr.bf16.mxu0 0
        %438 = vmatpush1.bf16.msra.mxu0 0
        %439 = vmatprep.subr.bf16.mxu0 0
        %440 = vmatpush1.bf16.msra.mxu0 0
        %441 = vmatprep.subr.bf16.mxu0 0
        %442 = vmatpush1.bf16.msra.mxu0 0
        %443 = vmatprep.subr.bf16.mxu0 0
        %444 = vmatpush1.bf16.msra.mxu0 0
        %445 = vmatprep.subr.bf16.mxu0 0
        %446 = vmatpush1.bf16.msra.mxu0 0
        %447 = vmatprep.mubr.bf16.mxu0 0
        %448 = vmatmul.mubr.bf16.gmra.mrb[0].mxu0 %v365
        %v449 = vpop.f32.mrb[0].mxu0
        %v450 = vadd.f32 0.0, %v449
        %v451 = vpop.f32.mrb[0].mxu0
        %v452 = vpop.f32.mrb[0].mxu0
        %v453 = vadd.f32 0.0, %v452
        %v454 = vpop.f32.mrb[0].mxu0
        %455 = vdwg.mxu0
        %v473 = vunpack.c.l.b16 %v312
        %v474 = vunpack.c.l.b16 %v313
        %v475 = vunpack.c.l.b16 %v314
        %v476 = vunpack.c.l.b16 %v315
        %v477 = vunpack.c.l.b16 %v316
        %v478 = vunpack.c.l.b16 %v317
        %v479 = vunpack.c.l.b16 %v318
        %v480 = vunpack.c.l.b16 %v319
        %v481 = vunpack.c.l.b16 %v320
        %v482 = vunpack.c.l.b16 %v321
        %v483 = vunpack.c.l.b16 %v322
        %v484 = vunpack.c.l.b16 %v323
        %v485 = vunpack.c.l.b16 %v324
        %v486 = vunpack.c.l.b16 %v325
        %v487 = vunpack.c.l.b16 %v326
        %v488 = vunpack.c.l.b16 %v327
        %v489 = vpack.c.b16 %v474, %v473
        %v490 = vpack.c.b16 %v476, %v475
        %v491 = vpack.c.b16 %v478, %v477
        %v492 = vpack.c.b16 %v480, %v479
        %v493 = vpack.c.b16 %v482, %v481
        %v494 = vpack.c.b16 %v484, %v483
        %v495 = vpack.c.b16 %v486, %v485
        %v496 = vpack.c.b16 %v488, %v487
        %505 = vmatprep.subr.bf16.mxu0 0
        %506 = vmatpush1.bf16.msra.mxu0 %v489
        %507 = vmatprep.subr.bf16.mxu0 0
        %508 = vmatpush1.bf16.msra.mxu0 %v490
        %509 = vmatprep.subr.bf16.mxu0 0
        %510 = vmatpush1.bf16.msra.mxu0 %v491
        %511 = vmatprep.subr.bf16.mxu0 0
        %512 = vmatpush1.bf16.msra.mxu0 %v492
        %513 = vmatprep.subr.bf16.mxu0 0
        %514 = vmatpush1.bf16.msra.mxu0 %v493
        %515 = vmatprep.subr.bf16.mxu0 0
        %516 = vmatpush1.bf16.msra.mxu0 %v494
        %517 = vmatprep.subr.bf16.mxu0 0
        %518 = vmatpush1.bf16.msra.mxu0 %v495
        %519 = vmatprep.subr.bf16.mxu0 0
        %520 = vmatpush1.bf16.msra.mxu0 %v496
        %521 = vmatprep.subr.bf16.mxu0 0
        %522 = vmatpush1.bf16.msra.mxu0 0
        %523 = vmatprep.subr.bf16.mxu0 0
        %524 = vmatpush1.bf16.msra.mxu0 0
        %525 = vmatprep.subr.bf16.mxu0 0
        %526 = vmatpush1.bf16.msra.mxu0 0
        %527 = vmatprep.subr.bf16.mxu0 0
        %528 = vmatpush1.bf16.msra.mxu0 0
        %529 = vmatprep.subr.bf16.mxu0 0
        %530 = vmatpush1.bf16.msra.mxu0 0
        %531 = vmatprep.subr.bf16.mxu0 0
        %532 = vmatpush1.bf16.msra.mxu0 0
        %533 = vmatprep.subr.bf16.mxu0 0
        %534 = vmatpush1.bf16.msra.mxu0 0
        %535 = vmatprep.subr.bf16.mxu0 0
        %536 = vmatpush1.bf16.msra.mxu0 0
        %537 = vmatprep.mubr.bf16.mxu0 0
        %538 = vmatmul.mubr.bf16.gmra.mrb[0].mxu0 %v351
        %v539 = vpop.f32.mrb[0].mxu0
        %v540 = vadd.f32 %v450, %v539
        %v541 = vpop.f32.mrb[0].mxu0
        %v542 = vpop.f32.mrb[0].mxu0
        %v543 = vadd.f32 %v453, %v542
        %v544 = vpop.f32.mrb[0].mxu0
        %545 = vdwg.mxu0
        %s546 = scalar_lea.vmem [#allocation3], 128
        %v547 = vld [vmem:[%s546] sm:$0xf]
        %v548 = vld [vmem:[%s546 + $0x4] sm:$0xf]
        %v549 = vld [vmem:[%s546 + $0x8] sm:$0xf]
        %v550 = vld [vmem:[%s546 + $0xc] sm:$0xf]
        %v551 = vld [vmem:[%s546 + $0x10] sm:$0xf]
        %v552 = vld [vmem:[%s546 + $0x14] sm:$0xf]
        %v553 = vld [vmem:[%s546 + $0x18] sm:$0xf]
        %v554 = vld [vmem:[%s546 + $0x1c] sm:$0xf]
        %v555 = vld [vmem:[%s546 + $0x20] sm:$0xf]
        %v556 = vld [vmem:[%s546 + $0x24] sm:$0xf]
        %v557 = vld [vmem:[%s546 + $0x28] sm:$0xf]
        %v558 = vld [vmem:[%s546 + $0x2c] sm:$0xf]
        %v559 = vld [vmem:[%s546 + $0x30] sm:$0xf]
        %v560 = vld [vmem:[%s546 + $0x34] sm:$0xf]
        %v561 = vld [vmem:[%s546 + $0x38] sm:$0xf]
        %v562 = vld [vmem:[%s546 + $0x3c] sm:$0xf]
        %v564 = vunpack.c.l.b16 %v311
        %v565 = vpack.c.b16 %v349, %v564
        %vm566 = vcmask 1046528
        %v567 = vrot.slane %v565, 1
        %v568 = vrot.slane %v352, 1
        %v569 = vsel %vm566, %v567, %v568
        %v587 = vunpack.c.l.b16 %v547
        %v588 = vunpack.c.l.b16 %v548
        %v589 = vunpack.c.l.b16 %v549
        %v590 = vunpack.c.l.b16 %v550
        %v591 = vunpack.c.l.b16 %v551
        %v592 = vunpack.c.l.b16 %v552
        %v593 = vunpack.c.l.b16 %v553
        %v594 = vunpack.c.l.b16 %v554
        %v595 = vunpack.c.l.b16 %v555
        %v596 = vunpack.c.l.b16 %v556
        %v597 = vunpack.c.l.b16 %v557
        %v598 = vunpack.c.l.b16 %v558
        %v599 = vunpack.c.l.b16 %v559
        %v600 = vunpack.c.l.b16 %v560
        %v601 = vunpack.c.l.b16 %v561
        %v602 = vunpack.c.l.b16 %v562
        %v603 = vpack.c.b16 %v588, %v587
        %v604 = vpack.c.b16 %v590, %v589
        %v605 = vpack.c.b16 %v592, %v591
        %v606 = vpack.c.b16 %v594, %v593
        %v607 = vpack.c.b16 %v596, %v595
        %v608 = vpack.c.b16 %v598, %v597
        %v609 = vpack.c.b16 %v600, %v599
        %v610 = vpack.c.b16 %v602, %v601
        %619 = vmatprep.subr.bf16.mxu0 0
        %620 = vmatpush1.bf16.msra.mxu0 %v603
        %621 = vmatprep.subr.bf16.mxu0 0
        %622 = vmatpush1.bf16.msra.mxu0 %v604
        %623 = vmatprep.subr.bf16.mxu0 0
        %624 = vmatpush1.bf16.msra.mxu0 %v605
        %625 = vmatprep.subr.bf16.mxu0 0
        %626 = vmatpush1.bf16.msra.mxu0 %v606
        %627 = vmatprep.subr.bf16.mxu0 0
        %628 = vmatpush1.bf16.msra.mxu0 %v607
        %629 = vmatprep.subr.bf16.mxu0 0
        %630 = vmatpush1.bf16.msra.mxu0 %v608
        %631 = vmatprep.subr.bf16.mxu0 0
        %632 = vmatpush1.bf16.msra.mxu0 %v609
        %633 = vmatprep.subr.bf16.mxu0 0
        %634 = vmatpush1.bf16.msra.mxu0 %v610
        %635 = vmatprep.subr.bf16.mxu0 0
        %636 = vmatpush1.bf16.msra.mxu0 0
        %637 = vmatprep.subr.bf16.mxu0 0
        %638 = vmatpush1.bf16.msra.mxu0 0
        %639 = vmatprep.subr.bf16.mxu0 0
        %640 = vmatpush1.bf16.msra.mxu0 0
        %641 = vmatprep.subr.bf16.mxu0 0
        %642 = vmatpush1.bf16.msra.mxu0 0
        %643 = vmatprep.subr.bf16.mxu0 0
        %644 = vmatpush1.bf16.msra.mxu0 0
        %645 = vmatprep.subr.bf16.mxu0 0
        %646 = vmatpush1.bf16.msra.mxu0 0
        %647 = vmatprep.subr.bf16.mxu0 0
        %648 = vmatpush1.bf16.msra.mxu0 0
        %649 = vmatprep.subr.bf16.mxu0 0
        %650 = vmatpush1.bf16.msra.mxu0 0
        %651 = vmatprep.mubr.bf16.mxu0 0
        %652 = vmatmul.mubr.bf16.gmra.mrb[0].mxu0 %v569
        %v653 = vpop.f32.mrb[0].mxu0
        %v654 = vadd.f32 0.0, %v653
        %v655 = vpop.f32.mrb[0].mxu0
        %v656 = vpop.f32.mrb[0].mxu0
        %v657 = vadd.f32 0.0, %v656
        %v658 = vpop.f32.mrb[0].mxu0
        %659 = vdwg.mxu0
        %v660 = vadd.f32 %v540, %v654
        %v661 = vadd.f32 %v543, %v657
        %v662 = vld [vmem:[%s2] sm:$0x1]
        %v664 = vlaneseq
        %v665 = vshrl.u32 %v664, 7
        %v666 = vsub.s32 0, %v665
        %v667 = vrot.slane %v662, %v666
        %v669 = vmul.f32 %v660, %v667
        %v670 = vmul.f32 %v661, %v667
        %v671 = vld [vmem:[%s3] sm:$0x1]
        %v673 = vlaneseq
        %v674 = vshrl.u32 %v673, 7
        %v675 = vsub.s32 0, %v674
        %v676 = vrot.slane %v671, %v675
        %v678 = vadd.f32 %v669, %v676
        %v679 = vadd.f32 %v670, %v676
        %v680 = vmax.f32 %v678, 0.0
        %v681 = vmax.f32 %v679, 0.0
        %vm682 = vcmask 1040384
        %vm683 = vsmask.f32 256
        %vm684 = vmand %vm682, %vm683
        %v685 = vld [vmem:[#allocation2] sm:$0x1]
        %v686 = vsel %vm684, 0, %v685
        %687 = vst [vmem:[#allocation2] sm:$0x1] %v686
        %vm688 = vsmask.f32 7938
        %vm689 = vmand %vm682, %vm688
        %v690 = vld [vmem:[#allocation2 + $0x8] sm:$0x1]
        %v691 = vsel %vm689, 0, %v690
        %692 = vst [vmem:[#allocation2 + $0x8] sm:$0x1] %v691
        %v693 = vpack.c.bf16 %v681, %v680
        %v695 = vunpack.c.l.b16 %v693
        %v696 = vunpack.c.h.b16 %v693
        %v697 = vpack.c.b16 %v695, %v695
        %v698 = vpack.c.b16 %v696, %v696
        %vm699 = vsmask.f32 4368
        %vm700 = vmor %vm683, %vm699
        %v702 = vshrl.u32 %v697, 16
        %v704 = vrot.slane %v702, 7
        %v705 = vshll.u32 %v697, 16
        %v707 = vor.u32 %v704, %v705
        %v708 = vrot.slane %v704, 4
        %v710 = vshrl.u32 %v698, 16
        %v712 = vrot.slane %v710, 7
        %v713 = vshll.u32 %v698, 16
        %v715 = vor.u32 %v712, %v713
        %v716 = vsel %vm700, %v708, %v715
        %v717 = vrot.slane %v712, 4
        %vm721 = vcmask 1043456
        %vm722 = vmand %vm721, %vm688
        %v723 = vld [vmem:[#allocation2] sm:$0xf]
        %v724 = vsel %vm722, %v707, %v723
        %725 = vst [vmem:[#allocation2] sm:$0xf] %v724
        %726 = vst [vmem:[#allocation2 + $0x4] sm:$0xf] %v716
        %v727 = vld [vmem:[#allocation2 + $0x8] sm:$0x1]
        %v728 = vsel %vm684, %v717, %v727
        %729 = vst [vmem:[#allocation2 + $0x8] sm:$0x1] %v728
        %v730 = vld [vmem:[#allocation2] sm:$0xf]
        %v731 = vld [vmem:[#allocation2 + $0x4] sm:$0xf]
        %v732 = vld [vmem:[#allocation6] sm:$0xf]
        %v733 = vld [vmem:[#allocation6 + $0x4] sm:$0xf]
        %v734 = vld [vmem:[#allocation6 + $0x8] sm:$0xf]
        %v735 = vld [vmem:[#allocation6 + $0xc] sm:$0xf]
        %v736 = vld [vmem:[#allocation6 + $0x10] sm:$0xf]
        %v737 = vld [vmem:[#allocation6 + $0x14] sm:$0xf]
        %v738 = vld [vmem:[#allocation6 + $0x18] sm:$0xf]
        %v739 = vld [vmem:[#allocation6 + $0x1c] sm:$0xf]
        %v740 = vld [vmem:[#allocation6 + $0x20] sm:$0xf]
        %v741 = vld [vmem:[#allocation6 + $0x24] sm:$0xf]
        %v742 = vld [vmem:[#allocation6 + $0x28] sm:$0xf]
        %v743 = vld [vmem:[#allocation6 + $0x2c] sm:$0xf]
        %v744 = vld [vmem:[#allocation6 + $0x30] sm:$0xf]
        %v745 = vld [vmem:[#allocation6 + $0x34] sm:$0xf]
        %v746 = vld [vmem:[#allocation6 + $0x38] sm:$0xf]
        %v747 = vld [vmem:[#allocation6 + $0x3c] sm:$0xf]
        %v748 = vld [vmem:[#allocation2 + $0x8] sm:$0x1]
        %s749 = scalar_lea.vmem [#allocation6], 64
        %v750 = vld [vmem:[%s749] sm:$0xf]
        %v751 = vld [vmem:[%s749 + $0x4] sm:$0xf]
        %v752 = vld [vmem:[%s749 + $0x8] sm:$0xf]
        %v753 = vld [vmem:[%s749 + $0xc] sm:$0xf]
        %v754 = vld [vmem:[%s749 + $0x10] sm:$0xf]
        %v755 = vld [vmem:[%s749 + $0x14] sm:$0xf]
        %v756 = vld [vmem:[%s749 + $0x18] sm:$0xf]
        %v757 = vld [vmem:[%s749 + $0x1c] sm:$0xf]
        %v758 = vld [vmem:[%s749 + $0x20] sm:$0xf]
        %v759 = vld [vmem:[%s749 + $0x24] sm:$0xf]
        %v760 = vld [vmem:[%s749 + $0x28] sm:$0xf]
        %v761 = vld [vmem:[%s749 + $0x2c] sm:$0xf]
        %v762 = vld [vmem:[%s749 + $0x30] sm:$0xf]
        %v763 = vld [vmem:[%s749 + $0x34] sm:$0xf]
        %v764 = vld [vmem:[%s749 + $0x38] sm:$0xf]
        %v765 = vld [vmem:[%s749 + $0x3c] sm:$0xf]
        %v769 = vunpack.c.l.b16 %v730
        %v770 = vunpack.c.l.b16 %v731
        %v771 = vunpack.c.l.b16 %v748
        %v772 = vpack.c.b16 %v770, %v769
        %v773 = vpack.c.b16 %v771, %v771
        %v775 = vshrl.u32 %v772, 16
        %v777 = vshll.u32 %v772, 16
        %v779 = vrot.slane %v777, 1
        %v780 = vor.u32 %v775, %v779
        %v782 = vshll.u32 %v773, 16
        %v784 = vrot.slane %v782, 1
        %v785 = vsel %vm353, %v780, %v784
        %v803 = vunpack.c.l.b16 %v750
        %v804 = vunpack.c.l.b16 %v751
        %v805 = vunpack.c.l.b16 %v752
        %v806 = vunpack.c.l.b16 %v753
        %v807 = vunpack.c.l.b16 %v754
        %v808 = vunpack.c.l.b16 %v755
        %v809 = vunpack.c.l.b16 %v756
        %v810 = vunpack.c.l.b16 %v757
        %v811 = vunpack.c.l.b16 %v758
        %v812 = vunpack.c.l.b16 %v759
        %v813 = vunpack.c.l.b16 %v760
        %v814 = vunpack.c.l.b16 %v761
        %v815 = vunpack.c.l.b16 %v762
        %v816 = vunpack.c.l.b16 %v763
        %v817 = vunpack.c.l.b16 %v764
        %v818 = vunpack.c.l.b16 %v765
        %v819 = vpack.c.b16 %v804, %v803
        %v820 = vpack.c.b16 %v806, %v805
        %v821 = vpack.c.b16 %v808, %v807
        %v822 = vpack.c.b16 %v810, %v809
        %v823 = vpack.c.b16 %v812, %v811
        %v824 = vpack.c.b16 %v814, %v813
        %v825 = vpack.c.b16 %v816, %v815
        %v826 = vpack.c.b16 %v818, %v817
        %835 = vmatprep.subr.bf16.mxu0 0
        %836 = vmatpush1.bf16.msra.mxu0 %v819
        %837 = vmatprep.subr.bf16.mxu0 0
        %838 = vmatpush1.bf16.msra.mxu0 %v820
        %839 = vmatprep.subr.bf16.mxu0 0
        %840 = vmatpush1.bf16.msra.mxu0 %v821
        %841 = vmatprep.subr.bf16.mxu0 0
        %842 = vmatpush1.bf16.msra.mxu0 %v822
        %843 = vmatprep.subr.bf16.mxu0 0
        %844 = vmatpush1.bf16.msra.mxu0 %v823
        %845 = vmatprep.subr.bf16.mxu0 0
        %846 = vmatpush1.bf16.msra.mxu0 %v824
        %847 = vmatprep.subr.bf16.mxu0 0
        %848 = vmatpush1.bf16.msra.mxu0 %v825
        %849 = vmatprep.subr.bf16.mxu0 0
        %850 = vmatpush1.bf16.msra.mxu0 %v826
        %851 = vmatprep.subr.bf16.mxu0 0
        %852 = vmatpush1.bf16.msra.mxu0 0
        %853 = vmatprep.subr.bf16.mxu0 0
        %854 = vmatpush1.bf16.msra.mxu0 0
        %855 = vmatprep.subr.bf16.mxu0 0
        %856 = vmatpush1.bf16.msra.mxu0 0
        %857 = vmatprep.subr.bf16.mxu0 0
        %858 = vmatpush1.bf16.msra.mxu0 0
        %859 = vmatprep.subr.bf16.mxu0 0
        %860 = vmatpush1.bf16.msra.mxu0 0
        %861 = vmatprep.subr.bf16.mxu0 0
        %862 = vmatpush1.bf16.msra.mxu0 0
        %863 = vmatprep.subr.bf16.mxu0 0
        %864 = vmatpush1.bf16.msra.mxu0 0
        %865 = vmatprep.subr.bf16.mxu0 0
        %866 = vmatpush1.bf16.msra.mxu0 0
        %867 = vmatprep.mubr.bf16.mxu0 0
        %868 = vmatmul.mubr.bf16.gmra.mrb[0].mxu0 %v785
        %v869 = vpop.f32.mrb[0].mxu0
        %v870 = vadd.f32 0.0, %v869
        %v871 = vpop.f32.mrb[0].mxu0
        %v872 = vpop.f32.mrb[0].mxu0
        %v873 = vadd.f32 0.0, %v872
        %v874 = vpop.f32.mrb[0].mxu0
        %875 = vdwg.mxu0
        %v893 = vunpack.c.l.b16 %v732
        %v894 = vunpack.c.l.b16 %v733
        %v895 = vunpack.c.l.b16 %v734
        %v896 = vunpack.c.l.b16 %v735
        %v897 = vunpack.c.l.b16 %v736
        %v898 = vunpack.c.l.b16 %v737
        %v899 = vunpack.c.l.b16 %v738
        %v900 = vunpack.c.l.b16 %v739
        %v901 = vunpack.c.l.b16 %v740
        %v902 = vunpack.c.l.b16 %v741
        %v903 = vunpack.c.l.b16 %v742
        %v904 = vunpack.c.l.b16 %v743
        %v905 = vunpack.c.l.b16 %v744
        %v906 = vunpack.c.l.b16 %v745
        %v907 = vunpack.c.l.b16 %v746
        %v908 = vunpack.c.l.b16 %v747
        %v909 = vpack.c.b16 %v894, %v893
        %v910 = vpack.c.b16 %v896, %v895
        %v911 = vpack.c.b16 %v898, %v897
        %v912 = vpack.c.b16 %v900, %v899
        %v913 = vpack.c.b16 %v902, %v901
        %v914 = vpack.c.b16 %v904, %v903
        %v915 = vpack.c.b16 %v906, %v905
        %v916 = vpack.c.b16 %v908, %v907
        %925 = vmatprep.subr.bf16.mxu0 0
        %926 = vmatpush1.bf16.msra.mxu0 %v909
        %927 = vmatprep.subr.bf16.mxu0 0
        %928 = vmatpush1.bf16.msra.mxu0 %v910
        %929 = vmatprep.subr.bf16.mxu0 0
        %930 = vmatpush1.bf16.msra.mxu0 %v911
        %931 = vmatprep.subr.bf16.mxu0 0
        %932 = vmatpush1.bf16.msra.mxu0 %v912
        %933 = vmatprep.subr.bf16.mxu0 0
        %934 = vmatpush1.bf16.msra.mxu0 %v913
        %935 = vmatprep.subr.bf16.mxu0 0
        %936 = vmatpush1.bf16.msra.mxu0 %v914
        %937 = vmatprep.subr.bf16.mxu0 0
        %938 = vmatpush1.bf16.msra.mxu0 %v915
        %939 = vmatprep.subr.bf16.mxu0 0
        %940 = vmatpush1.bf16.msra.mxu0 %v916
        %941 = vmatprep.subr.bf16.mxu0 0
        %942 = vmatpush1.bf16.msra.mxu0 0
        %943 = vmatprep.subr.bf16.mxu0 0
        %944 = vmatpush1.bf16.msra.mxu0 0
        %945 = vmatprep.subr.bf16.mxu0 0
        %946 = vmatpush1.bf16.msra.mxu0 0
        %947 = vmatprep.subr.bf16.mxu0 0
        %948 = vmatpush1.bf16.msra.mxu0 0
        %949 = vmatprep.subr.bf16.mxu0 0
        %950 = vmatpush1.bf16.msra.mxu0 0
        %951 = vmatprep.subr.bf16.mxu0 0
        %952 = vmatpush1.bf16.msra.mxu0 0
        %953 = vmatprep.subr.bf16.mxu0 0
        %954 = vmatpush1.bf16.msra.mxu0 0
        %955 = vmatprep.subr.bf16.mxu0 0
        %956 = vmatpush1.bf16.msra.mxu0 0
        %957 = vmatprep.mubr.bf16.mxu0 0
        %958 = vmatmul.mubr.bf16.gmra.mrb[0].mxu0 %v772
        %v959 = vpop.f32.mrb[0].mxu0
        %v960 = vadd.f32 %v870, %v959
        %v961 = vpop.f32.mrb[0].mxu0
        %v962 = vpop.f32.mrb[0].mxu0
        %v963 = vadd.f32 %v873, %v962
        %v964 = vpop.f32.mrb[0].mxu0
        %965 = vdwg.mxu0
        %v966 = vld [vmem:[#allocation2] sm:$0xe]
        %s967 = scalar_lea.vmem [#allocation6], 128
        %v968 = vld [vmem:[%s967] sm:$0xf]
        %v969 = vld [vmem:[%s967 + $0x4] sm:$0xf]
        %v970 = vld [vmem:[%s967 + $0x8] sm:$0xf]
        %v971 = vld [vmem:[%s967 + $0xc] sm:$0xf]
        %v972 = vld [vmem:[%s967 + $0x10] sm:$0xf]
        %v973 = vld [vmem:[%s967 + $0x14] sm:$0xf]
        %v974 = vld [vmem:[%s967 + $0x18] sm:$0xf]
        %v975 = vld [vmem:[%s967 + $0x1c] sm:$0xf]
        %v976 = vld [vmem:[%s967 + $0x20] sm:$0xf]
        %v977 = vld [vmem:[%s967 + $0x24] sm:$0xf]
        %v978 = vld [vmem:[%s967 + $0x28] sm:$0xf]
        %v979 = vld [vmem:[%s967 + $0x2c] sm:$0xf]
        %v980 = vld [vmem:[%s967 + $0x30] sm:$0xf]
        %v981 = vld [vmem:[%s967 + $0x34] sm:$0xf]
        %v982 = vld [vmem:[%s967 + $0x38] sm:$0xf]
        %v983 = vld [vmem:[%s967 + $0x3c] sm:$0xf]
        %v985 = vunpack.c.l.b16 %v966
        %v986 = vpack.c.b16 %v770, %v985
        %v987 = vrot.slane %v986, 1
        %v988 = vrot.slane %v773, 1
        %v989 = vsel %vm566, %v987, %v988
        %v1007 = vunpack.c.l.b16 %v968
        %v1008 = vunpack.c.l.b16 %v969
        %v1009 = vunpack.c.l.b16 %v970
        %v1010 = vunpack.c.l.b16 %v971
        %v1011 = vunpack.c.l.b16 %v972
        %v1012 = vunpack.c.l.b16 %v973
        %v1013 = vunpack.c.l.b16 %v974
        %v1014 = vunpack.c.l.b16 %v975
        %v1015 = vunpack.c.l.b16 %v976
        %v1016 = vunpack.c.l.b16 %v977
        %v1017 = vunpack.c.l.b16 %v978
        %v1018 = vunpack.c.l.b16 %v979
        %v1019 = vunpack.c.l.b16 %v980
        %v1020 = vunpack.c.l.b16 %v981
        %v1021 = vunpack.c.l.b16 %v982
        %v1022 = vunpack.c.l.b16 %v983
        %v1023 = vpack.c.b16 %v1008, %v1007
        %v1024 = vpack.c.b16 %v1010, %v1009
        %v1025 = vpack.c.b16 %v1012, %v1011
        %v1026 = vpack.c.b16 %v1014, %v1013
        %v1027 = vpack.c.b16 %v1016, %v1015
        %v1028 = vpack.c.b16 %v1018, %v1017
        %v1029 = vpack.c.b16 %v1020, %v1019
        %v1030 = vpack.c.b16 %v1022, %v1021
        %1039 = vmatprep.subr.bf16.mxu0 0
        %1040 = vmatpush1.bf16.msra.mxu0 %v1023
        %1041 = vmatprep.subr.bf16.mxu0 0
        %1042 = vmatpush1.bf16.msra.mxu0 %v1024
        %1043 = vmatprep.subr.bf16.mxu0 0
        %1044 = vmatpush1.bf16.msra.mxu0 %v1025
        %1045 = vmatprep.subr.bf16.mxu0 0
        %1046 = vmatpush1.bf16.msra.mxu0 %v1026
        %1047 = vmatprep.subr.bf16.mxu0 0
        %1048 = vmatpush1.bf16.msra.mxu0 %v1027
        %1049 = vmatprep.subr.bf16.mxu0 0
        %1050 = vmatpush1.bf16.msra.mxu0 %v1028
        %1051 = vmatprep.subr.bf16.mxu0 0
        %1052 = vmatpush1.bf16.msra.mxu0 %v1029
        %1053 = vmatprep.subr.bf16.mxu0 0
        %1054 = vmatpush1.bf16.msra.mxu0 %v1030
        %1055 = vmatprep.subr.bf16.mxu0 0
        %1056 = vmatpush1.bf16.msra.mxu0 0
        %1057 = vmatprep.subr.bf16.mxu0 0
        %1058 = vmatpush1.bf16.msra.mxu0 0
        %1059 = vmatprep.subr.bf16.mxu0 0
        %1060 = vmatpush1.bf16.msra.mxu0 0
        %1061 = vmatprep.subr.bf16.mxu0 0
        %1062 = vmatpush1.bf16.msra.mxu0 0
        %1063 = vmatprep.subr.bf16.mxu0 0
        %1064 = vmatpush1.bf16.msra.mxu0 0
        %1065 = vmatprep.subr.bf16.mxu0 0
        %1066 = vmatpush1.bf16.msra.mxu0 0
        %1067 = vmatprep.subr.bf16.mxu0 0
        %1068 = vmatpush1.bf16.msra.mxu0 0
        %1069 = vmatprep.subr.bf16.mxu0 0
        %1070 = vmatpush1.bf16.msra.mxu0 0
        %1071 = vmatprep.mubr.bf16.mxu0 0
        %1072 = vmatmul.mubr.bf16.gmra.mrb[0].mxu0 %v989
        %v1073 = vpop.f32.mrb[0].mxu0
        %v1074 = vadd.f32 0.0, %v1073
        %v1075 = vpop.f32.mrb[0].mxu0
        %v1076 = vpop.f32.mrb[0].mxu0
        %v1077 = vadd.f32 0.0, %v1076
        %v1078 = vpop.f32.mrb[0].mxu0
        %1079 = vdwg.mxu0
        %v1080 = vadd.f32 %v960, %v1074
        %v1081 = vadd.f32 %v963, %v1077
        %v1082 = vunpack.c.l.bf16 %v308
        %v1083 = vunpack.c.l.bf16 %v309
        %v1084 = vunpack.c.l.bf16 %v310
        %v1085 = vld [vmem:[%s5] sm:$0x1]
        %v1087 = vlaneseq
        %v1088 = vshrl.u32 %v1087, 7
        %v1089 = vsub.s32 0, %v1088
        %v1090 = vrot.slane %v1085, %v1089
        %v1092 = vmul.f32 %v1080, %v1090
        %v1093 = vmul.f32 %v1081, %v1090
        %v1094 = vld [vmem:[%s6] sm:$0x1]
        %v1096 = vlaneseq
        %v1097 = vshrl.u32 %v1096, 7
        %v1098 = vsub.s32 0, %v1097
        %v1099 = vrot.slane %v1094, %v1098
        %v1101 = vadd.f32 %v1092, %v1099
        %v1102 = vadd.f32 %v1093, %v1099
        %vm1106 = vcmask 1046528
        %v1107 = vrot.slane %v1082, 1
        %v1108 = vrot.slane %v1083, 1
        %v1109 = vsel %vm1106, %v1107, %v1108
        %v1110 = vrot.slane %v1084, 1
        %v1111 = vsel %vm1106, %v1108, %v1110
        %v1114 = vadd.f32 %v1101, %v1109
        %v1115 = vadd.f32 %v1102, %v1111
        %v1116 = vmax.f32 %v1114, 0.0
        %v1117 = vmax.f32 %v1115, 0.0
        %1118 = vst [vmem:[%s301] sm:$0xff] %v1116
        %1119 = vst [vmem:[%s301 + $0x8] sm:$0xff] %v1117
        %s1120 = sand.u32 %s183, 1
        %s1121 = scalar_lea.sflag [#allocation5], %s1120
        %s1122 = sand.u32 %s183, 1
        %s1123 = smul.addr %s1122, 16
        %s1124 = scalar_lea.vmem [#allocation8], %s1123
        // Predicated region
        $region57: #{tpu_custom_call.1} parent=47 // pred_check
          %p1125 = pneg %p193
        $region58: #{tpu_custom_call.1} parent=47 // pred_check_branch
          %1127 = sbr.rel (%p1125) target = $region60
        $region59: #{tpu_custom_call.1} parent=47 // pred_region
          %s1129 = ssub.s32 256, 256
          %1130 = vsyncadd %s1121, %s1129
          %s1131 = smul.addr %s23, 2
          %s1132 = smul.addr %s1131, 128
          %s1133 = scalar_lea.hbm %s7, %s1132
          %s1134 = sshll.u32 %s1124, 4
          %s1135 = int_to_ptr.vmem [resolvable:$true] %s1134
          %1140 = dma.vmem_to_hbm [thread:$0]  %s1135, 256, %s1133, %s1121, 128, 128, 8
        $region60: #{tpu_custom_call.1} parent=47 // pred_fallthru
          _
      $region48: #{tpu_custom_call.1} parent=5 // pred_fallthru
        _
      %p1141 = scmp.le.s32.totalorder 2, %s18
      // Predicated region
      $region61: #{tpu_custom_call.1} parent=5 // pred_check
        %p1142 = pneg %p1141
      $region62: #{tpu_custom_call.1} parent=5 // pred_check_branch
        %1144 = sbr.rel (%p1142) target = $region64
      $region63: #{tpu_custom_call.1} parent=5 // pred_region
        %s1145 = ssub.s32 %s18, 2
        // Predicated region
        $region65: #{tpu_custom_call.1} parent=63 // pred_check
          %p1146 = pneg %p199
        $region66: #{tpu_custom_call.1} parent=63 // pred_check_branch
          %1148 = sbr.rel (%p1146) target = $region68
        $region67: #{tpu_custom_call.1} parent=63 // pred_region
          %s1149 = sand.u32 %s184, 1
          %s1150 = scalar_lea.sflag [#allocation5], %s1149
          %s1151 = sand.u32 %s184, 1
          %s1152 = smul.addr %s1151, 16
          %s1153 = scalar_lea.vmem [#allocation8], %s1152
          %1154 = dma.done %s1150, 256
        $region68: #{tpu_custom_call.1} parent=63 // pred_fallthru
          _
      $region64: #{tpu_custom_call.1} parent=5 // pred_fallthru
        _
    $region6: #{tpu_custom_call.1} parent=1 // loop_footer
      %s22 = sadd.s32 1, %s18
    $region7: #{tpu_custom_call.1} parent=1 // loop_footer_branch
      %17 = sbr.rel target = $region3
    $region8: #{tpu_custom_call.1} parent=1 // loop_exit
      _
    %1155 = vsyncpa [#allocation4], 1
    %s1156 = scalar_lea.sflag [#allocation4], 1
    %1157 = vsyncpa %s1156, 1
    %1158 = vsyncpa [#allocation7], 1
    %1159 = vsyncpa [#allocation5], 1
    %s1160 = scalar_lea.sflag [#allocation5], 1
    %1161 = vsyncpa %s1160, 1

</llo_original>
